<compile_context>
chip_gen: v7x
topology: tpu7x:2x2x1
jax: 0.10.0
libtpu: 0.0.40
codegen_flags: <defaults>
</compile_context>

<pallas_src>
import jax
import jax.numpy as jnp
from jax.experimental import pallas as pl
from jax.experimental.pallas import tpu as pltpu


def _ma_hunter_kernel(w_ref, x_ref, o_ref):
    # w_ref: (P*2H, P*A*H)  block-diagonal fused weight; constant index_map
    #                       keeps it VMEM-resident across all batch tiles.
    # x_ref: (TR, P*2H)     packed input tile, lane-dense (last dim = 128).
    # o_ref: (TR, P*A*H)    packed output tile, lane-dense (multiple of 128).
    o_ref[...] = jnp.dot(
        x_ref[...], w_ref[...], preferred_element_type=jnp.float32
    ).astype(o_ref.dtype)


def ma_hunter_forward(state, w1, w2, num_hunters, num_actions, tile_rows=2048):
    """state: (n, num_hunters, 2) float32
       w1: (hidden*H, 2*H)   (PyTorch Linear layout: out, in)
       w2: (A*H, hidden*H)
       returns: (n, num_hunters, num_actions)
    """
    n = state.shape[0]
    feat_in = 2 * num_hunters
    feat_out = num_actions * num_hunters

    # Fuse the two bias-free Linears:  out = x @ (W2 @ W1).T
    wc = jnp.dot(w2, w1, preferred_element_type=jnp.float32)  # (A*H, 2*H)

    # Pack P samples per physical row so the kernel tiles are lane-dense.
    P = max(1, 128 // feat_in) if feat_in <= 128 else 1
    in_w = P * feat_in
    out_w = P * feat_out

    # Block-diagonal fused weight: sample q's features map only to sample q's
    # outputs.  w_block[p*feat_in + i, q*feat_out + o] = (p == q) * wc[o, i].
    eye = jnp.eye(P, dtype=wc.dtype)
    w_block = jnp.einsum("pq,oi->piqo", eye, wc).reshape(in_w, out_w)

    # _encode_state: flatten per-sample (free reshape).
    x_flat = state.reshape(n, feat_in)

    # Rows of the packed layout; shrink the tile for small batches.
    rows = pl.cdiv(n, P)
    tr = int(tile_rows)
    if rows <= tr:
        tr = max(8, pl.cdiv(rows, 8) * 8)
    rows_pad = pl.cdiv(rows, tr) * tr
    n_pad = rows_pad * P
    if n_pad != n:
        x_flat = jnp.pad(x_flat, ((0, n_pad - n), (0, 0)))
    # Row-major reshape -> pure bitcast, no data movement.
    x_packed = x_flat.reshape(rows_pad, in_w)

    out_packed = pl.pallas_call(
        _ma_hunter_kernel,
        out_shape=jax.ShapeDtypeStruct((rows_pad, out_w), jnp.float32),
        grid_spec=pltpu.PrefetchScalarGridSpec(
            num_scalar_prefetch=0,
            grid=(rows_pad // tr,),
            in_specs=[
                # Fused block-diag weight: constant block index -> fetched once.
                pl.BlockSpec((in_w, out_w), lambda i: (0, 0)),
                # Packed input: tiled along rows, full (lane-dense) width.
                pl.BlockSpec((tr, in_w), lambda i: (i, 0)),
            ],
            out_specs=pl.BlockSpec((tr, out_w), lambda i: (i, 0)),
        ),
        compiler_params=pltpu.CompilerParams(
            dimension_semantics=("parallel",),       # megacore on v7x
            vmem_limit_bytes=32 * 1024 * 1024,        # small tiles; safe on all chips
        ),
    )(w_block, x_packed)

    # Unpack (free reshape), drop batch padding, view as (n, H, A).
    out = out_packed.reshape(n_pad, feat_out)[:n]
    return out.reshape(n, num_hunters, num_actions)


if __name__ == "__main__":
    # Small, forward-consistent shapes.
    num_hunters = 4
    hidden_dim = 32          # hidden_dim * num_hunters = 128
    num_actions = 4
    batch = 8

    key = jax.random.PRNGKey(0)
    k_state, k_w1, k_w2 = jax.random.split(key, 3)

    # state: (n, num_hunters, 2) — positions of each hunter
    state = jax.random.normal(k_state, (batch, num_hunters, 2), dtype=jnp.float32)

    # Deterministic weights in PyTorch Linear layout (out_features, in_features).
    in1, out1 = 2 * num_hunters, hidden_dim * num_hunters
    in2, out2 = hidden_dim * num_hunters, num_actions * num_hunters
    w1 = (jax.random.uniform(k_w1, (out1, in1), dtype=jnp.float32) - 0.5) * (2.0 / jnp.sqrt(in1))
    w2 = (jax.random.uniform(k_w2, (out2, in2), dtype=jnp.float32) - 0.5) * (2.0 / jnp.sqrt(in2))

    q = ma_hunter_forward(state, w1, w2, num_hunters, num_actions)
    q = jax.block_until_ready(q)

    # Reference check in plain JAX (two-matmul, unfused).
    x_flat = state.reshape(batch, -1)
    ref = (x_flat @ w1.T @ w2.T).reshape(batch, num_hunters, num_actions)
    assert q.shape == (batch, num_hunters, num_actions)
    assert jnp.allclose(q, ref, atol=1e-5, rtol=1e-5), float(jnp.max(jnp.abs(q - ref)))

    # TODO(synk): select_action (epsilon-greedy argmax with host-side numpy RNG
    # and a step counter) is host control flow in the reference, not part of the
    # forward pass; not kernelized.

    print("KERNEL_OK")
</pallas_src>

<mosaic_0001>
module attributes {stable_mosaic.version = 11 : i64} {
  func.func @_ma_hunter_kernel(%arg0: i32, %arg1: memref<128x256xf32, #tpu.memory_space<vmem>>, %arg2: memref<8x128xf32, #tpu.memory_space<vmem>>, %arg3: memref<8x256xf32, #tpu.memory_space<vmem>>) attributes {dimension_semantics = [#tpu.dimension_semantics<parallel>], iteration_bounds = array<i64: 1>, scalar_prefetch = 0 : i64, scratch_operands = 0 : i64, tpu.core_type = #tpu.core_type<tc>, window_params = [{pipeline_mode = #tpu.pipeline_mode<synchronous>, transform_indices = @transform_0, window_bounds = array<i64: 128, 256>}, {transform_indices = @transform_1, window_bounds = array<i64: 8, 128>}, {transform_indices = @transform_2, window_bounds = array<i64: 8, 256>}]} {
    %c0 = arith.constant 0 : index
    %c0_0 = arith.constant 0 : index
    %0 = vector.load %arg2[%c0, %c0_0] : memref<8x128xf32, #tpu.memory_space<vmem>>, vector<8x128xf32>
    %c0_1 = arith.constant 0 : index
    %c0_2 = arith.constant 0 : index
    %1 = vector.load %arg1[%c0_1, %c0_2] : memref<128x256xf32, #tpu.memory_space<vmem>>, vector<128x256xf32>
    %cst = arith.constant dense<0.000000e+00> : vector<8x256xf32>
    %2 = tpu.matmul %0, %1, %cst {dimension_numbers = #tpu.dot_dimension_numbers<[1], [0], [0], [1], [0, 0, 1, 1], [], []>} : vector<8x128xf32>, vector<128x256xf32>, vector<8x256xf32> -> vector<8x256xf32>
    %c0_3 = arith.constant 0 : index
    %c0_4 = arith.constant 0 : index
    %3 = vector.load %arg3[%c0_3, %c0_4] : memref<8x256xf32, #tpu.memory_space<vmem>>, vector<8x256xf32>
    tpu.vector_store %arg3[%c0_3, %c0_4], %2 {strides = array<i32>} : memref<8x256xf32, #tpu.memory_space<vmem>>, vector<8x256xf32>,
    return
  }
  func.func @transform_0(%arg0: i32) -> (i32, i32) {
    %c0_i32 = arith.constant 0 : i32
    %c0_i32_0 = arith.constant 0 : i32
    %c0_i32_1 = arith.constant 0 : i32
    return %c0_i32, %c0_i32_0 : i32, i32
  }
  func.func @transform_1(%arg0: i32) -> (i32, i32) {
    %c0_i32 = arith.constant 0 : i32
    %c0_i32_0 = arith.constant 0 : i32
    return %arg0, %c0_i32 : i32, i32
  }
  func.func @transform_2(%arg0: i32) -> (i32, i32) {
    %c0_i32 = arith.constant 0 : i32
    %c0_i32_0 = arith.constant 0 : i32
    return %arg0, %c0_i32 : i32, i32
  }
}

</mosaic_0001>

<llo_original>
// kernel: tpu_custom_call.1
$region0: #{tpu_custom_call.1}
  #allocation0 [shape = 'u32[]', space=smem, size = 0x4, offset = 0x4, fixed_abs, tag = 'smem constant byte address 0x4 - core index']
  #allocation1 [shape = 'u32[144,128]{1,0:T(1,128)}', space=vmem, size = 0x12000, scoped, tag = 'internal scratch']
  %s0 = inlined_call_operand.hbm [shape: f32[128,256], index: 0, kind: input, shape index: {}]
  %s1 = inlined_call_operand.hbm [shape: f32[8,128], index: 1, kind: input, shape index: {}]
  %s2 = inlined_call_operand.hbm [shape: f32[8,256], index: 2, kind: output, shape index: {}]
  %s3 = sld [smem:[#allocation0]]
  $region26: #{tpu_custom_call.1} parent=0
    _
  %s5 = ssub.s32 1, %s3
  %s6 = scalar_select 0, %s5, %s3
  $region1: #{tpu_custom_call.1} parent=0
    #allocation2 [shape = 'u8[131072]{0}', space=vmem, size = 0x20000, scoped, tag = 'input window, operand 0, single buffered']
    #allocation3 [shape = 's32[1]{0}', space=sflag, size = 0x4, scoped, tag = 'scoped memory for tpu_custom_call.1']
    #allocation4 [shape = 's32[1]{0}', space=sflag, size = 0x4, scoped, tag = 'scoped memory for tpu_custom_call.1']
    #allocation5 [shape = 'u8[4096]{0}', space=vmem, size = 0x1000, scoped, tag = 'input window, operand 1, single buffered']
    #allocation6 [shape = 's32[1]{0}', space=sflag, size = 0x4, scoped, tag = 'scoped memory for tpu_custom_call.1']
    #allocation7 [shape = 'u8[8192]{0}', space=vmem, size = 0x2000, scoped, tag = 'output window, operand 0, single buffered']
    %7 = vsyncpa [#allocation3], 0
    %8 = vsyncpa [#allocation6], 0
    %9 = vsyncpa [#allocation4], 0
    // Predicated region
    $region2: #{tpu_custom_call.1} parent=1 // pred_check
      _
    $region3: #{tpu_custom_call.1} parent=1 // pred_check_branch
      %11 = sbr.rel (0) target = $region5
    $region4: #{tpu_custom_call.1} parent=1 // pred_region
      %s13 = ssub.s32 4096, 4096
      %14 = vsyncadd [#allocation3], %s13
      %s15 = sshll.u32 [#allocation2], 4
      %s16 = int_to_ptr.vmem [resolvable:$true] %s15
      %21 = dma.hbm_to_vmem [thread:$0]  %s0, 4096, %s16, [#allocation3], 256, 256, 16
    $region5: #{tpu_custom_call.1} parent=1 // pred_fallthru
      _
    // Predicated region
    $region6: #{tpu_custom_call.1} parent=1 // pred_check
      _
    $region7: #{tpu_custom_call.1} parent=1 // pred_check_branch
      %23 = sbr.rel (0) target = $region9
    $region8: #{tpu_custom_call.1} parent=1 // pred_region
      %s25 = ssub.s32 128, 128
      %26 = vsyncadd [#allocation6], %s25
      %s28 = sshll.u32 [#allocation5], 4
      %s29 = int_to_ptr.vmem [resolvable:$true] %s28
      %31 = dma.hbm_to_vmem [thread:$0]  %s1, 128, %s29, [#allocation6]
    $region9: #{tpu_custom_call.1} parent=1 // pred_fallthru
      _
    // Predicated region
    $region10: #{tpu_custom_call.1} parent=1 // pred_check
      _
    $region11: #{tpu_custom_call.1} parent=1 // pred_check_branch
      %33 = sbr.rel (0) target = $region13
    $region12: #{tpu_custom_call.1} parent=1 // pred_region
      %34 = dma.done [#allocation3], 4096
    $region13: #{tpu_custom_call.1} parent=1 // pred_fallthru
      _
    // Predicated region
    $region14: #{tpu_custom_call.1} parent=1 // pred_check
      _
    $region15: #{tpu_custom_call.1} parent=1 // pred_check_branch
      %36 = sbr.rel (0) target = $region17
    $region16: #{tpu_custom_call.1} parent=1 // pred_region
      %37 = dma.done [#allocation6], 128
    $region17: #{tpu_custom_call.1} parent=1 // pred_fallthru
      _
    %v38 = vld [vmem:[#allocation5] sm:$0xff]
    %v39 = vld [vmem:[#allocation2] sm:$0xff]
    %v40 = vld [vmem:[#allocation2 + $0x8] sm:$0xff]
    %v41 = vld [vmem:[#allocation2 + $0x10] sm:$0xff]
    %v42 = vld [vmem:[#allocation2 + $0x18] sm:$0xff]
    %v43 = vld [vmem:[#allocation2 + $0x20] sm:$0xff]
    %v44 = vld [vmem:[#allocation2 + $0x28] sm:$0xff]
    %v45 = vld [vmem:[#allocation2 + $0x30] sm:$0xff]
    %v46 = vld [vmem:[#allocation2 + $0x38] sm:$0xff]
    %v47 = vld [vmem:[#allocation2 + $0x40] sm:$0xff]
    %v48 = vld [vmem:[#allocation2 + $0x48] sm:$0xff]
    %v49 = vld [vmem:[#allocation2 + $0x50] sm:$0xff]
    %v50 = vld [vmem:[#allocation2 + $0x58] sm:$0xff]
    %v51 = vld [vmem:[#allocation2 + $0x60] sm:$0xff]
    %v52 = vld [vmem:[#allocation2 + $0x68] sm:$0xff]
    %v53 = vld [vmem:[#allocation2 + $0x70] sm:$0xff]
    %v54 = vld [vmem:[#allocation2 + $0x78] sm:$0xff]
    %v55 = vld [vmem:[#allocation2 + $0x80] sm:$0xff]
    %v56 = vld [vmem:[#allocation2 + $0x88] sm:$0xff]
    %v57 = vld [vmem:[#allocation2 + $0x90] sm:$0xff]
    %v58 = vld [vmem:[#allocation2 + $0x98] sm:$0xff]
    %v59 = vld [vmem:[#allocation2 + $0xa0] sm:$0xff]
    %v60 = vld [vmem:[#allocation2 + $0xa8] sm:$0xff]
    %v61 = vld [vmem:[#allocation2 + $0xb0] sm:$0xff]
    %v62 = vld [vmem:[#allocation2 + $0xb8] sm:$0xff]
    %v63 = vld [vmem:[#allocation2 + $0xc0] sm:$0xff]
    %v64 = vld [vmem:[#allocation2 + $0xc8] sm:$0xff]
    %v65 = vld [vmem:[#allocation2 + $0xd0] sm:$0xff]
    %v66 = vld [vmem:[#allocation2 + $0xd8] sm:$0xff]
    %v67 = vld [vmem:[#allocation2 + $0xe0] sm:$0xff]
    %v68 = vld [vmem:[#allocation2 + $0xe8] sm:$0xff]
    %v69 = vld [vmem:[#allocation2 + $0xf0] sm:$0xff]
    %v70 = vld [vmem:[#allocation2 + $0xf8] sm:$0xff]
    %71 = vmatprep.subr.mxu0 %v40
    %72 = vmatpush1.msra.mxu0 %v39
    %73 = vmatprep.subr.mxu0 %v42
    %74 = vmatpush1.msra.mxu0 %v41
    %75 = vmatprep.subr.mxu0 %v44
    %76 = vmatpush1.msra.mxu0 %v43
    %77 = vmatprep.subr.mxu0 %v46
    %78 = vmatpush1.msra.mxu0 %v45
    %79 = vmatprep.subr.mxu0 %v48
    %80 = vmatpush1.msra.mxu0 %v47
    %81 = vmatprep.subr.mxu0 %v50
    %82 = vmatpush1.msra.mxu0 %v49
    %83 = vmatprep.subr.mxu0 %v52
    %84 = vmatpush1.msra.mxu0 %v51
    %85 = vmatprep.subr.mxu0 %v54
    %86 = vmatpush1.msra.mxu0 %v53
    %87 = vmatprep.subr.mxu0 %v56
    %88 = vmatpush1.msra.mxu0 %v55
    %89 = vmatprep.subr.mxu0 %v58
    %90 = vmatpush1.msra.mxu0 %v57
    %91 = vmatprep.subr.mxu0 %v60
    %92 = vmatpush1.msra.mxu0 %v59
    %93 = vmatprep.subr.mxu0 %v62
    %94 = vmatpush1.msra.mxu0 %v61
    %95 = vmatprep.subr.mxu0 %v64
    %96 = vmatpush1.msra.mxu0 %v63
    %97 = vmatprep.subr.mxu0 %v66
    %98 = vmatpush1.msra.mxu0 %v65
    %99 = vmatprep.subr.mxu0 %v68
    %100 = vmatpush1.msra.mxu0 %v67
    %101 = vmatprep.subr.mxu0 %v70
    %102 = vmatpush1.msra.mxu0 %v69
    %103 = vmatprep.subr.mxu0 0.0
    %104 = vmatpush1.msra.mxu0 0.0
    %105 = vmatprep.subr.mxu0 0.0
    %106 = vmatpush1.msra.mxu0 0.0
    %107 = vmatprep.subr.mxu0 0.0
    %108 = vmatpush1.msra.mxu0 0.0
    %109 = vmatprep.subr.mxu0 0.0
    %110 = vmatpush1.msra.mxu0 0.0
    %111 = vmatprep.subr.mxu0 0.0
    %112 = vmatpush1.msra.mxu0 0.0
    %113 = vmatprep.subr.mxu0 0.0
    %114 = vmatpush1.msra.mxu0 0.0
    %115 = vmatprep.subr.mxu0 0.0
    %116 = vmatpush1.msra.mxu0 0.0
    %117 = vmatprep.subr.mxu0 0.0
    %118 = vmatpush1.msra.mxu0 0.0
    %119 = vmatprep.subr.mxu0 0.0
    %120 = vmatpush1.msra.mxu0 0.0
    %121 = vmatprep.subr.mxu0 0.0
    %122 = vmatpush1.msra.mxu0 0.0
    %123 = vmatprep.subr.mxu0 0.0
    %124 = vmatpush1.msra.mxu0 0.0
    %125 = vmatprep.subr.mxu0 0.0
    %126 = vmatpush1.msra.mxu0 0.0
    %127 = vmatprep.subr.mxu0 0.0
    %128 = vmatpush1.msra.mxu0 0.0
    %129 = vmatprep.subr.mxu0 0.0
    %130 = vmatpush1.msra.mxu0 0.0
    %131 = vmatprep.subr.mxu0 0.0
    %132 = vmatpush1.msra.mxu0 0.0
    %133 = vmatprep.subr.mxu0 0.0
    %134 = vmatpush1.msra.mxu0 0.0
    %135 = vmatprep.mubr.f32.mxu0 0.0
    %136 = vmatmul.mubr.f32.gmra.mrb[0].mxu0 %v38
    %v137 = vpop.f32.mrb[0].mxu0
    %v138 = vadd.f32 0.0, %v137
    %v139 = vpop.f32.mrb[0].mxu0
    %v140 = vadd.f32 0.0, %v139
    %141 = vdwg.mxu0
    %142 = vst [vmem:[#allocation7] sm:$0xff] %v138
    %143 = vst [vmem:[#allocation7 + $0x8] sm:$0xff] %v140
    // Predicated region
    $region18: #{tpu_custom_call.1} parent=1 // pred_check
      _
    $region19: #{tpu_custom_call.1} parent=1 // pred_check_branch
      %145 = sbr.rel (0) target = $region21
    $region20: #{tpu_custom_call.1} parent=1 // pred_region
      %s147 = ssub.s32 256, 256
      %148 = vsyncadd [#allocation4], %s147
      %s150 = sshll.u32 [#allocation7], 4
      %s151 = int_to_ptr.vmem [resolvable:$true] %s150
      %153 = dma.vmem_to_hbm [thread:$0]  %s151, 256, %s2, [#allocation4]
    $region21: #{tpu_custom_call.1} parent=1 // pred_fallthru
      _
    // Predicated region
    $region22: #{tpu_custom_call.1} parent=1 // pred_check
      _
    $region23: #{tpu_custom_call.1} parent=1 // pred_check_branch
      %155 = sbr.rel (0) target = $region25
    $region24: #{tpu_custom_call.1} parent=1 // pred_region
      %156 = dma.done [#allocation4], 256
    $region25: #{tpu_custom_call.1} parent=1 // pred_fallthru
      _
    %157 = vsyncpa [#allocation3], 1
    %158 = vsyncpa [#allocation6], 1
    %159 = vsyncpa [#allocation4], 1

</llo_original>
